<compile_context>
chip_gen: v6e
topology: v6e:2x2x1
jax: 0.10.0
libtpu: 0.0.40
codegen_flags: <defaults>
</compile_context>

<pallas_src>
import functools

import numpy as np
import jax
import jax.numpy as jnp
from jax.experimental import pallas as pl
from jax.experimental.pallas import tpu as pltpu


# ----------------------------------------------------------------------------
# Generation-aware scoped-VMEM limit (review: do not hard-cap at 32 MiB).
# ----------------------------------------------------------------------------
def _vmem_limit_bytes():
    try:
        info = pltpu.get_tpu_info()
        cap = getattr(info, "vmem_capacity_bytes", None) or getattr(info, "vmem_bytes", None)
        if cap:
            return int(min(cap * 3 // 4, 96 * 1024 * 1024))
    except Exception:
        pass
    return 48 * 1024 * 1024


_VMEM_LIMIT = _vmem_limit_bytes()


def _row_tile(m):
    """Largest divisor of m among {512..8} (review: MLP row-tile cap -> 512)."""
    for t in (512, 256, 128, 64, 32, 16, 8):
        if t <= m and m % t == 0:
            return t
    return m


def _row_tile16(m):
    """Like _row_tile but >=16 rows (bf16 sublane packing) or the full extent."""
    for t in (512, 256, 128, 64, 32, 16):
        if t <= m and m % t == 0:
            return t
    return m


# ----------------------------------------------------------------------------
# Fused MLP-chain kernel (encoders / decoder)
# ----------------------------------------------------------------------------
def _mlp_kernel(*refs, acts):
    n_layers = len(acts)
    x_ref = refs[0]
    w_refs = refs[1:1 + n_layers]
    b_refs = refs[1 + n_layers:1 + 2 * n_layers]
    alpha_ref = refs[1 + 2 * n_layers]          # SMEM (>= n_layers,) f32 PReLU slopes
    o_ref = refs[2 + 2 * n_layers]

    h = x_ref[...]
    for i, act in enumerate(acts):
        h = jnp.dot(h.astype(jnp.bfloat16), w_refs[i][...],
                    preferred_element_type=jnp.float32) + b_refs[i][...]
        if act == "relu":
            h = jnp.maximum(h, 0.0)
        elif act == "prelu":
            a = alpha_ref[i]
            h = jnp.where(h >= 0.0, h, a * h)
    o_ref[...] = h


def mlp_chain(x, weights, biases, acts, alphas=None):
    """act_k(... act_0(x @ w_0 + b_0) ...) fused into one pallas_call."""
    m, _ = x.shape
    out_dim = weights[-1].shape[1]
    if alphas is None:
        alphas = jnp.zeros((len(weights),), jnp.float32)
    tm = _row_tile(m)

    in_specs = [pl.BlockSpec((tm, x.shape[1]), lambda r: (r, 0))]
    in_specs += [pl.BlockSpec(w.shape, lambda r: (0, 0)) for w in weights]
    in_specs += [pl.BlockSpec(b.shape, lambda r: (0, 0)) for b in biases]
    in_specs += [pl.BlockSpec(memory_space=pltpu.MemorySpace.SMEM)]

    return pl.pallas_call(
        functools.partial(_mlp_kernel, acts=tuple(acts)),
        grid=(m // tm,),
        out_shape=jax.ShapeDtypeStruct((m, out_dim), jnp.float32),
        in_specs=in_specs,
        out_specs=pl.BlockSpec((tm, out_dim), lambda r: (r, 0)),
        compiler_params=pltpu.CompilerParams(
            dimension_semantics=("parallel",),
            vmem_limit_bytes=_VMEM_LIMIT),
    )(x, *weights, *biases, alphas)


# ----------------------------------------------------------------------------
# Per-layer node projections (own pallas_call, parallel node-tile grid)
# ----------------------------------------------------------------------------
def _node_proj_kernel(x_ref, wsrc_ref, wdst_ref, psrc_ref, pdst_ref):
    x16 = x_ref[...].astype(jnp.bfloat16)
    psrc_ref[...] = jnp.dot(x16, wsrc_ref[...],
                            preferred_element_type=jnp.float32).astype(jnp.bfloat16)
    pdst_ref[...] = jnp.dot(x16, wdst_ref[...],
                            preferred_element_type=jnp.float32)


def node_projections(nfeats, w_src, w_dst):
    n, dn = nfeats.shape
    tm = _row_tile16(n)           # bf16 output -> 16-row multiple (or full extent)
    return pl.pallas_call(
        _node_proj_kernel,
        grid=(n // tm,),
        out_shape=(jax.ShapeDtypeStruct((n, w_src.shape[1]), jnp.bfloat16),
                   jax.ShapeDtypeStruct((n, w_dst.shape[1]), jnp.float32)),
        in_specs=[pl.BlockSpec((tm, dn), lambda r: (r, 0)),
                  pl.BlockSpec(w_src.shape, lambda r: (0, 0)),
                  pl.BlockSpec(w_dst.shape, lambda r: (0, 0))],
        out_specs=(pl.BlockSpec((tm, w_src.shape[1]), lambda r: (r, 0)),
                   pl.BlockSpec((tm, w_dst.shape[1]), lambda r: (r, 0))),
        compiler_params=pltpu.CompilerParams(
            dimension_semantics=("parallel",),
            vmem_limit_bytes=_VMEM_LIMIT),
    )(nfeats, w_src, w_dst)


# ----------------------------------------------------------------------------
# Fused EGAT + projection + residual layer kernel (dst-sorted, node-block grid)
# ----------------------------------------------------------------------------
def _head_bcast(x, heads, fdim):
    """(rows, H) -> (rows, H*F): per-head broadcast over its F lanes (VPU)."""
    rows = x.shape[0]
    if heads == 1:
        return jnp.broadcast_to(x, (rows, fdim))
    cols = [jnp.broadcast_to(x[:, h:h + 1], (rows, fdim)) for h in range(heads)]
    return jnp.concatenate(cols, axis=1)


def _egat_edge_kernel(ts_ref, nt_ref,
                      ef_ref, src_ref, dstl_ref, dstr_ref, valid_ref,
                      nfeats_ref, pdst_ref, psrc_ref,
                      w_fij_ref, bias_ref, attn_ref,
                      pnw_ref, pnb_ref, pew_ref, peb_ref,
                      nh_ref, eh_ref,
                      m_sc, l_sc, acc_sc,
                      *, heads, fdim, node_block, last_layer):
    H, F, NB = heads, fdim, node_block
    HF = H * F
    b = pl.program_id(0)
    j = pl.program_id(1)

    @pl.when(j == 0)
    def _init():
        m_sc[...] = jnp.full(m_sc.shape, -1e30, jnp.float32)
        l_sc[...] = jnp.zeros(l_sc.shape, jnp.float32)
        acc_sc[...] = jnp.zeros(acc_sc.shape, jnp.float32)

    @pl.when(j < nt_ref[b])
    def _compute():
        te = ef_ref.shape[0]
        n_all = psrc_ref.shape[0]

        ef = ef_ref[...]                                  # (TE, De) f32
        valid = valid_ref[...]                            # (TE, 1)  f32
        src_i = src_ref[...]                              # (TE, 1)  int32 (global)
        dstl_c = dstl_ref[...]                            # (TE, 1)  int32 (local, -1 pad)
        dstl_r = dstr_ref[...]                            # (1, TE)  int32 (lane-dense)

        # One-hots built on the VPU; dst one-hots are block-local (NB wide) and
        # the (NB, TE) variant is built directly from the lane-dense row (no
        # transpose).  Padding edges (dst_local = -1) produce all-zero rows.
        # TODO(synk): replace the src one-hot matmul gather with a DMA /
        # dynamic-gather of psrc rows for very large graphs.
        iota_src = jax.lax.broadcasted_iota(jnp.int32, (te, n_all), 1)
        src_oh = jnp.where(iota_src == src_i, 1.0, 0.0).astype(jnp.bfloat16)
        iota_d = jax.lax.broadcasted_iota(jnp.int32, (te, NB), 1)
        dst_oh = jnp.where(iota_d == dstl_c, 1.0, 0.0).astype(jnp.bfloat16)
        iota_dt = jax.lax.broadcasted_iota(jnp.int32, (NB, te), 0)
        dst_oh_t = jnp.where(iota_dt == dstl_r, 1.0, 0.0).astype(jnp.bfloat16)

        # gathers of the precomputed node projections (MXU, bf16 inputs)
        g_src = jnp.dot(src_oh, psrc_ref[...],
                        preferred_element_type=jnp.float32)            # (TE, 2HF)
        f_ni = g_src[:, :HF]                                            # f_ni[src]
        h_src = g_src[:, HF:]                                           # W_node x[src]
        pdst16 = pdst_ref[...].astype(jnp.bfloat16)                     # (NB, HF)
        f_nj = jnp.dot(dst_oh, pdst16, preferred_element_type=jnp.float32)
        f_fij = jnp.dot(ef.astype(jnp.bfloat16), w_fij_ref[...],
                        preferred_element_type=jnp.float32)             # (TE, HF)

        f_e = f_ni + f_nj + f_fij + bias_ref[...]
        f_out = jnp.where(f_e >= 0.0, f_e, 0.01 * f_e)                  # leaky_relu(0.01)

        # edge output: (head-mean if last) -> projection_edge -> +residual
        if last_layer:
            eo = f_out[:, :F]
            for h in range(1, H):
                eo = eo + f_out[:, h * F:(h + 1) * F]
            eo = eo * (1.0 / H)
        else:
            eo = f_out
        eh_ref[...] = (jnp.dot(eo.astype(jnp.bfloat16), pew_ref[...],
                               preferred_element_type=jnp.float32)
                       + peb_ref[...] + ef)

        # attention logits on the VPU; padding edges masked to -1e30
        weighted = f_out * attn_ref[...]                                # (TE, HF)
        s_cols = [jnp.sum(weighted[:, h * F:(h + 1) * F], axis=1, keepdims=True)
                  for h in range(H)]
        s = s_cols[0] if H == 1 else jnp.concatenate(s_cols, axis=1)    # (TE, H)
        s = jnp.where(valid > 0.0, s, -1e30)

        # online softmax with a per-head *tile-global* running max (shared by
        # every destination of this node block; a consistent shift so the
        # softmax result is unchanged up to underflow of far-below-max logits).
        m_old = m_sc[...]                                               # (1, H)
        m_new = jnp.maximum(m_old, jnp.max(s, axis=0, keepdims=True))
        alpha = jnp.exp(m_old - m_new)                                  # (1, H)
        p = jnp.exp(s - m_new)                                          # (TE, H)

        # single fused bf16 scatter matmul for [p * h_src | p]
        p_full = _head_bcast(p, H, F)                                   # (TE, HF)
        contrib = (p_full * h_src).astype(jnp.bfloat16)
        scat_in = jnp.concatenate([contrib, p.astype(jnp.bfloat16)], axis=1)
        scat = jnp.dot(dst_oh_t, scat_in,
                       preferred_element_type=jnp.float32)              # (NB, HF+H)

        acc_sc[...] = _head_bcast(alpha, H, F) * acc_sc[...] + scat[:, :HF]
        l_sc[...] = alpha * l_sc[...] + scat[:, HF:HF + H]
        m_sc[...] = m_new

    @pl.when(j == pl.num_programs(1) - 1)
    def _finalize():
        l = l_sc[...]
        inv = pl.reciprocal(jnp.where(l > 0.0, l, 1.0), approx=True)    # (NB, H)
        nh_agg = acc_sc[...] * _head_bcast(inv, H, F)                   # (NB, HF)
        if last_layer:
            no = nh_agg[:, :F]
            for h in range(1, H):
                no = no + nh_agg[:, h * F:(h + 1) * F]
            no = no * (1.0 / H)
        else:
            no = nh_agg
        nh_ref[...] = (jnp.dot(no.astype(jnp.bfloat16), pnw_ref[...],
                               preferred_element_type=jnp.float32)
                       + pnb_ref[...] + nfeats_ref[...])


def egat_layer(layer, nfeats, efeats_p, graph, head, last_layer):
    n_pad, dn = nfeats.shape
    e_pad, de = efeats_p.shape
    NB = graph["node_block"]
    TE = graph["edge_tile"]
    num_blocks = graph["num_blocks"]
    max_tiles = graph["max_tiles"]
    fdim = layer["w_fij"].shape[1] // head
    hf = head * fdim
    assert n_pad == num_blocks * NB and e_pad % TE == 0

    # crude VMEM budget check (review: fail early instead of thrashing on v7x)
    vmem_est = (2 * TE * (2 * de * 4 + 3 * 4 + 4)          # edge tiles in/out (dbl-buf)
                + 2 * NB * (2 * dn * 4 + hf * 4)           # nfeats / nh / pdst blocks
                + 2 * n_pad * 2 * hf * 2                   # psrc resident (dbl-buf)
                + NB * (hf + head) * 4 + head * 4)         # softmax scratch
    if vmem_est > _VMEM_LIMIT:
        raise ValueError(f"EGAT VMEM estimate {vmem_est}B exceeds {_VMEM_LIMIT}B; "
                         "reduce edge_tile / node_block")

    # projections computed once per layer in a parallel node-tile kernel
    psrc, pdst = node_projections(nfeats, layer["w_src"], layer["w_dst"])

    def etile(b, j, ts, nt):
        return (ts[b] + jnp.minimum(j, nt[b] - 1), 0)

    def etile_row(b, j, ts, nt):
        return (0, ts[b] + jnp.minimum(j, nt[b] - 1))

    nblock = lambda b, j, ts, nt: (b, 0)
    whole = lambda b, j, ts, nt: (0, 0)

    # TODO(synk): single-buffer the constant-index-map inputs (weights, psrc)
    # via pipeline_mode=pl.Buffered(1) for extra VMEM headroom on v7x.
    in_specs = [
        pl.BlockSpec((TE, de), etile),                     # edge features tile
        pl.BlockSpec((TE, 1), etile),                      # src indices (global)
        pl.BlockSpec((TE, 1), etile),                      # dst indices (block-local)
        pl.BlockSpec((1, TE), etile_row),                  # dst indices (lane-dense)
        pl.BlockSpec((TE, 1), etile),                      # valid mask
        pl.BlockSpec((NB, dn), nblock),                    # nfeats block (residual)
        pl.BlockSpec((NB, hf), nblock),                    # pdst window (f_nj)
        pl.BlockSpec((n_pad, 2 * hf), whole),              # psrc table (src gather)
        pl.BlockSpec(layer["w_fij"].shape, whole),
        pl.BlockSpec(layer["bias"].shape, whole),
        pl.BlockSpec(layer["attn"].shape, whole),
        pl.BlockSpec(layer["proj_n_w"].shape, whole),
        pl.BlockSpec(layer["proj_n_b"].shape, whole),
        pl.BlockSpec(layer["proj_e_w"].shape, whole),
        pl.BlockSpec(layer["proj_e_b"].shape, whole),
    ]
    out_specs = [pl.BlockSpec((NB, dn), nblock),           # nh (finalized per block)
                 pl.BlockSpec((TE, de), etile)]            # eh edge tile
    scratch = [pltpu.VMEM((1, head), jnp.float32),         # tile-global running max
               pltpu.VMEM((NB, head), jnp.float32),        # running softmax denom
               pltpu.VMEM((NB, hf), jnp.float32)]          # running weighted acc

    kern = functools.partial(_egat_edge_kernel, heads=head, fdim=fdim,
                             node_block=NB, last_layer=last_layer)
    nh, eh = pl.pallas_call(
        kern,
        grid_spec=pltpu.PrefetchScalarGridSpec(
            num_scalar_prefetch=2,
            grid=(num_blocks, max_tiles),
            in_specs=in_specs,
            out_specs=out_specs,
            scratch_shapes=scratch),
        out_shape=(jax.ShapeDtypeStruct((n_pad, dn), jnp.float32),
                   jax.ShapeDtypeStruct((e_pad, de), jnp.float32)),
        compiler_params=pltpu.CompilerParams(
            dimension_semantics=("parallel", "arbitrary"),
            vmem_limit_bytes=_VMEM_LIMIT),
    )(graph["tile_start"], graph["ntiles"],
      efeats_p, graph["src_col"], graph["dstl_col"], graph["dstl_row"],
      graph["valid_col"], nfeats, pdst, psrc,
      layer["w_fij"], layer["bias"], layer["attn"],
      layer["proj_n_w"], layer["proj_n_b"], layer["proj_e_w"], layer["proj_e_b"])
    return nh, eh


# ----------------------------------------------------------------------------
# One-time host-side graph preprocessing: dst-sorted, node-block bucketed edges
# ----------------------------------------------------------------------------
def prepare_graph(src, dst, n_nodes, node_block=256, edge_tile=256):
    src = np.asarray(src, np.int32)
    dst = np.asarray(dst, np.int32)
    nb, te = int(node_block), int(edge_tile)
    assert te % 128 == 0, "edge_tile must be a multiple of 128 (lane-dense dst row)"
    assert nb % 8 == 0, "node_block must be a multiple of 8"
    num_blocks = max(1, -(-n_nodes // nb))
    n_pad = num_blocks * nb

    order = np.argsort(dst, kind="stable")
    src_s, dst_s = src[order], dst[order]
    blk = dst_s // nb

    perm_c, src_c, dstl_c, valid_c, ntiles = [], [], [], [], []
    for b in range(num_blocks):
        sel = np.nonzero(blk == b)[0]
        cnt = len(sel)
        nt = max(1, -(-cnt // te))
        pad = nt * te - cnt
        perm_c.append(np.concatenate([order[sel], np.zeros(pad, np.int64)]))
        src_c.append(np.concatenate([src_s[sel], np.zeros(pad, np.int32)]))
        dstl_c.append(np.concatenate([dst_s[sel] - b * nb, np.full(pad, -1, np.int32)]))
        valid_c.append(np.concatenate([np.ones(cnt, np.float32), np.zeros(pad, np.float32)]))
        ntiles.append(nt)

    ntiles = np.asarray(ntiles, np.int32)
    tile_start = np.zeros(num_blocks, np.int32)
    if num_blocks > 1:
        tile_start[1:] = np.cumsum(ntiles)[:-1]
    perm = np.concatenate(perm_c).astype(np.int32)
    src_p = np.concatenate(src_c).astype(np.int32)
    dstl_p = np.concatenate(dstl_c).astype(np.int32)
    valid_p = np.concatenate(valid_c).astype(np.float32)
    e_pad = perm.shape[0]

    return dict(
        n_pad=n_pad, e_pad=e_pad, num_blocks=num_blocks,
        node_block=nb, edge_tile=te, max_tiles=int(ntiles.max()),
        tile_start=jnp.asarray(tile_start), ntiles=jnp.asarray(ntiles),
        perm=jnp.asarray(perm),
        src_col=jnp.asarray(src_p.reshape(e_pad, 1)),
        dstl_col=jnp.asarray(dstl_p.reshape(e_pad, 1)),
        dstl_row=jnp.asarray(dstl_p.reshape(1, e_pad)),
        valid_col=jnp.asarray(valid_p.reshape(e_pad, 1)),
    )


# ----------------------------------------------------------------------------
# Full forward
# ----------------------------------------------------------------------------
def ablation_symgnn_forward(prep, graph, ntype_onehot_pad, efeats, heads, n_nodes):
    # node encoder: Embedding -> ReLU -> Linear -> ReLU (Emb+ReLU+Linear folded)
    nh = mlp_chain(ntype_onehot_pad, [prep["enc_n_tab"]], [prep["enc_n_b"]], ["relu"])
    # edge encoder: Linear -> ReLU -> Linear -> ReLU fused in one kernel
    eh = mlp_chain(efeats, [prep["enc_e_w0"], prep["enc_e_w1"]],
                   [prep["enc_e_b0"], prep["enc_e_b1"]], ["relu", "relu"])
    # reorder encoded edge features into the dst-sorted / block-padded layout
    # (kept in this layout for every layer; padding rows zeroed once)
    eh = jnp.take(eh, graph["perm"], axis=0) * graph["valid_col"]

    h_list = []
    num_layers = len(heads)
    for i in range(num_layers):
        last = (i == num_layers - 1)
        nh, eh = egat_layer(prep["layers"][i], nh, eh, graph, heads[i], last)
        h_list.append(nh[:n_nodes])
        # TODO(synk): nn.Dropout treated as identity (dropout_ratio=0 / eval mode).

    # node decoder: 4 x (Linear -> PReLU) + Linear fused in one kernel
    h = mlp_chain(nh, prep["dec_w"], prep["dec_b"],
                  ["prelu"] * 4 + ["none"], alphas=prep["dec_prelu"])
    return h_list, h[:n_nodes]


# ----------------------------------------------------------------------------
# Parameters (shapes from Ablation_SymGNN.__init__) and one-time preparation
# ----------------------------------------------------------------------------
def init_params(key, num_ntypes, emb_dim, out_dim, efeat_dim, heads):
    keys = list(jax.random.split(key, 128))
    it = iter(keys)

    def nrm(shape, scale=0.2):
        return scale * jax.random.normal(next(it), shape, jnp.float32)

    params = {
        "emb_table": nrm((num_ntypes, emb_dim)),
        "enc_n_w": nrm((emb_dim, emb_dim)), "enc_n_b": nrm((emb_dim,)),
        "enc_e_w0": nrm((efeat_dim, emb_dim)), "enc_e_b0": nrm((emb_dim,)),
        "enc_e_w1": nrm((emb_dim, emb_dim)), "enc_e_b1": nrm((emb_dim,)),
        "layers": [],
        "dec_w": [], "dec_b": [], "dec_prelu": [0.25, 0.25, 0.25, 0.25],
    }
    for h in heads:
        params["layers"].append({
            "egat": {
                "w_ni":   nrm((emb_dim, h * emb_dim)),
                "w_nj":   nrm((emb_dim, h * emb_dim)),
                "w_fij":  nrm((emb_dim, h * emb_dim)),
                "w_node": nrm((emb_dim, h * emb_dim)),
                "attn":   nrm((h, emb_dim)),
                "bias":   nrm((h * emb_dim,)),
            },
            "proj_n_w": nrm((h * emb_dim, emb_dim)), "proj_n_b": nrm((emb_dim,)),
            "proj_e_w": nrm((h * emb_dim, emb_dim)), "proj_e_b": nrm((emb_dim,)),
        })
    for _ in range(4):
        params["dec_w"].append(nrm((emb_dim, emb_dim)))
        params["dec_b"].append(nrm((emb_dim,)))
    params["dec_w"].append(nrm((emb_dim, out_dim)))
    params["dec_b"].append(nrm((out_dim,)))
    return params


def prepare_params(params, heads):
    """One-time transforms: weight concat/fold, bf16 cast, bias row reshape."""
    bf = lambda a: a.astype(jnp.bfloat16)
    row = lambda b: b.reshape(1, -1).astype(jnp.float32)
    prep = {
        "enc_n_tab": bf(jnp.maximum(params["emb_table"], 0.0) @ params["enc_n_w"]),
        "enc_n_b": row(params["enc_n_b"]),
        "enc_e_w0": bf(params["enc_e_w0"]), "enc_e_b0": row(params["enc_e_b0"]),
        "enc_e_w1": bf(params["enc_e_w1"]), "enc_e_b1": row(params["enc_e_b1"]),
        "dec_w": [bf(w) for w in params["dec_w"]],
        "dec_b": [row(b) for b in params["dec_b"]],
        "dec_prelu": jnp.array(params["dec_prelu"] + [0.0], jnp.float32),
        "layers": [],
    }
    for li, _h in enumerate(heads):
        lp = params["layers"][li]
        eg = lp["egat"]
        prep["layers"].append({
            "w_src": bf(jnp.concatenate([eg["w_ni"], eg["w_node"]], axis=1)),  # [f_ni|h_node]
            "w_dst": bf(eg["w_nj"]),
            "w_fij": bf(eg["w_fij"]),
            "bias": row(eg["bias"]),
            "attn": row(eg["attn"]),                    # (1, H*F), head-major
            "proj_n_w": bf(lp["proj_n_w"]), "proj_n_b": row(lp["proj_n_b"]),
            "proj_e_w": bf(lp["proj_e_w"]), "proj_e_b": row(lp["proj_e_b"]),
        })
    return prep


# ----------------------------------------------------------------------------
if __name__ == "__main__":
    N_NODES, N_EDGES = 24, 448
    NUM_NTYPES, EMB_DIM, OUT_DIM, EFEAT_DIM = 5, 32, 3, 4
    HEADS = [2, 1]          # last layer must use 1 head (torch applies
                            # Linear(out_dim*head, out_dim) after nh.mean(1))
    NODE_BLOCK, EDGE_TILE = 8, 128   # small so the demo exercises multi-block,
                                     # multi-tile online softmax + tile skipping

    key = jax.random.PRNGKey(0)
    k_nt, k_ef, k_src, k_dst, k_par = jax.random.split(key, 5)

    ntypes = jax.random.randint(k_nt, (N_NODES,), 0, NUM_NTYPES)
    efeats = jax.random.normal(k_ef, (N_EDGES, EFEAT_DIM), jnp.float32)
    src = jax.random.randint(k_src, (N_EDGES,), 0, N_NODES)
    dst = jax.random.randint(k_dst, (N_EDGES,), 0, N_NODES)

    graph = prepare_graph(np.asarray(src), np.asarray(dst), N_NODES,
                          node_block=NODE_BLOCK, edge_tile=EDGE_TILE)

    params = init_params(k_par, NUM_NTYPES, EMB_DIM, OUT_DIM, EFEAT_DIM, HEADS)
    prep = prepare_params(params, HEADS)

    # nfeats.squeeze(1) + embedding lookup expressed as a one-hot row select,
    # zero-padded to the node-block boundary (padded nodes have no edges).
    onehot = jax.nn.one_hot(ntypes, NUM_NTYPES, dtype=jnp.float32)
    onehot_pad = jnp.zeros((graph["n_pad"], NUM_NTYPES), jnp.float32).at[:N_NODES].set(onehot)

    h_list, h = ablation_symgnn_forward(prep, graph, onehot_pad, efeats, HEADS, N_NODES)
    jax.block_until_ready(h)
    for hl in h_list:
        jax.block_until_ready(hl)

    assert h.shape == (N_NODES, OUT_DIM)
    assert all(hl.shape == (N_NODES, EMB_DIM) for hl in h_list)
    assert bool(jnp.all(jnp.isfinite(h)))
    print("KERNEL_OK")
</pallas_src>

<mosaic_0001>
module attributes {stable_mosaic.version = 11 : i64} {
  func.func @_mlp_kernel(%arg0: i32, %arg1: memref<8x5xf32, #tpu.memory_space<vmem>>, %arg2: memref<5x32xbf16, #tpu.memory_space<vmem>>, %arg3: memref<1x32xf32, #tpu.memory_space<vmem>>, %arg4: memref<1xf32, #tpu.memory_space<smem>>, %arg5: memref<8x32xf32, #tpu.memory_space<vmem>>) attributes {dimension_semantics = [#tpu.dimension_semantics<parallel>], iteration_bounds = array<i64: 3>, scalar_prefetch = 0 : i64, scratch_operands = 0 : i64, tpu.core_type = #tpu.core_type<tc>, window_params = [{transform_indices = @transform_0, window_bounds = array<i64: 8, 5>}, {pipeline_mode = #tpu.pipeline_mode<synchronous>, transform_indices = @transform_1, window_bounds = array<i64: 5, 32>}, {pipeline_mode = #tpu.pipeline_mode<synchronous>, transform_indices = @transform_2, window_bounds = array<i64: 1, 32>}, {transform_indices = @transform_3, window_bounds = array<i64: 1>}, {transform_indices = @transform_4, window_bounds = array<i64: 8, 32>}]} {
    %c0 = arith.constant 0 : index
    %c0_0 = arith.constant 0 : index
    %0 = vector.load %arg1[%c0, %c0_0] : memref<8x5xf32, #tpu.memory_space<vmem>>, vector<8x5xf32>
    %1 = arith.truncf %0 : vector<8x5xf32> to vector<8x5xbf16>
    %c0_1 = arith.constant 0 : index
    %c0_2 = arith.constant 0 : index
    %2 = vector.load %arg2[%c0_1, %c0_2] : memref<5x32xbf16, #tpu.memory_space<vmem>>, vector<5x32xbf16>
    %cst = arith.constant dense<0.000000e+00> : vector<8x32xf32>
    %3 = tpu.matmul %1, %2, %cst {dimension_numbers = #tpu.dot_dimension_numbers<[1], [0], [0], [1], [0, 0, 1, 1], [], []>} : vector<8x5xbf16>, vector<5x32xbf16>, vector<8x32xf32> -> vector<8x32xf32>
    %c0_3 = arith.constant 0 : index
    %c0_4 = arith.constant 0 : index
    %4 = vector.load %arg3[%c0_3, %c0_4] : memref<1x32xf32, #tpu.memory_space<vmem>>, vector<1x32xf32>
    %5 = vector.broadcast %4 : vector<1x32xf32> to vector<8x32xf32>
    %6 = arith.addf %3, %5 : vector<8x32xf32>
    %cst_5 = arith.constant 0.000000e+00 : f32
    %7 = vector.broadcast %cst_5 : f32 to vector<8x32xf32>
    %8 = arith.maximumf %6, %7 : vector<8x32xf32>
    %c0_6 = arith.constant 0 : index
    %c0_7 = arith.constant 0 : index
    %9 = vector.load %arg5[%c0_6, %c0_7] : memref<8x32xf32, #tpu.memory_space<vmem>>, vector<8x32xf32>
    tpu.vector_store %arg5[%c0_6, %c0_7], %8 {strides = array<i32>} : memref<8x32xf32, #tpu.memory_space<vmem>>, vector<8x32xf32>,
    return
  }
  func.func @transform_0(%arg0: i32) -> (i32, i32) {
    %c0_i32 = arith.constant 0 : i32
    %c0_i32_0 = arith.constant 0 : i32
    return %arg0, %c0_i32 : i32, i32
  }
  func.func @transform_1(%arg0: i32) -> (i32, i32) {
    %c0_i32 = arith.constant 0 : i32
    %c0_i32_0 = arith.constant 0 : i32
    %c0_i32_1 = arith.constant 0 : i32
    return %c0_i32, %c0_i32_0 : i32, i32
  }
  func.func @transform_2(%arg0: i32) -> (i32, i32) {
    %c0_i32 = arith.constant 0 : i32
    %c0_i32_0 = arith.constant 0 : i32
    %c0_i32_1 = arith.constant 0 : i32
    return %c0_i32, %c0_i32_0 : i32, i32
  }
  func.func @transform_3(%arg0: i32) -> i32 {
    %c0_i32 = arith.constant 0 : i32
    %c0_i32_0 = arith.constant 0 : i32
    return %c0_i32 : i32
  }
  func.func @transform_4(%arg0: i32) -> (i32, i32) {
    %c0_i32 = arith.constant 0 : i32
    %c0_i32_0 = arith.constant 0 : i32
    return %arg0, %c0_i32 : i32, i32
  }
}

</mosaic_0001>

<llo_original>
// kernel: tpu_custom_call.1
$region0: #{tpu_custom_call.1}
  #allocation0 [shape = 'u32[]', space=smem, size = 0x4, offset = 0x4, fixed_abs, tag = 'smem constant byte address 0x4 - core index']
  #allocation1 [shape = 'u32[144,128]{1,0:T(1,128)}', space=vmem, size = 0x12000, scoped, tag = 'internal scratch']
  #allocation2 [shape = 'f32[1]{0:T(128)S(6)}', space=smem, size = 0x200, scoped, tag = 'scoped memory for tpu_custom_call.1']
  %s0 = inlined_call_operand.vmem [shape: f32[24,5], index: 0, kind: input, shape index: {}]
  %s1 = inlined_call_operand.vmem [shape: bf16[5,32], index: 1, kind: input, shape index: {}]
  %s2 = inlined_call_operand.vmem [shape: f32[1,32], index: 2, kind: input, shape index: {}]
  %s3 = inlined_call_operand.<no memory space> [shape: f32[1], index: 3, kind: input, shape index: {}]
  %s4 = inlined_call_operand.hbm [shape: f32[24,32], index: 4, kind: output, shape index: {}]
  %s5 = sld [smem:[#allocation0]]
  $region49: #{tpu_custom_call.1} parent=0
    _
  %s7 = ssub.s32 1, %s5
  %s8 = scalar_select 0, %s7, %s5
  %9 = sst [smem:[#allocation2]] %s3
  $region1: #{tpu_custom_call.1} parent=0
    #allocation3 [shape = 'u8[8192]{0}', space=vmem, size = 0x2000, scoped, tag = 'output window, operand 0']
    #allocation4 [shape = 's32[2]{0}', space=sflag, size = 0x8, scoped, tag = 'scoped memory for tpu_custom_call.1']
    %10 = vsyncpa [#allocation4], 0
    %s11 = scalar_lea.sflag [#allocation4], 1
    %12 = vsyncpa %s11, 0
    loop: start=0, step=1, limit=5
    $region2: #{tpu_custom_call.1} parent=1 // loop_pre_header
      _
    $region3: #{tpu_custom_call.1} parent=1 // loop_header
      %s14 = sphi 0, %s18
      %p15 = scmp.ge.s32.totalorder %s14, 5
      %s24 = sphi 0, %s26
      %s27 = sphi 0, %s24
      %s28 = sphi 0, %s27
      %s44 = sphi 0, %s28
      %s48 = sphi 0, %s48
      %s50 = sphi 0, %s48
      %s51 = sphi 0, %s50
      %s65 = sphi 0, %s51
      %s69 = sphi 0, %s69
      %s71 = sphi 0, %s69
      %s72 = sphi 0, %s71
      %s86 = sphi 0, %s72
      %s90 = sphi 0, %s90
      %s92 = sphi 0, %s90
      %s93 = sphi 0, %s92
      %s107 = sphi 0, %s93
      %s113 = sphi 0, %s115
      %s116 = sphi 0, %s113
      %s117 = sphi 0, %s116
      %s133 = sphi 0, %s117
    $region4: #{tpu_custom_call.1} parent=1 // loop_header_branch
      %17 = sbr.rel (%p15) target = $region8
    $region5: #{tpu_custom_call.1} parent=1 // loop_body
      %s19 = ssub.s32 %s14, 1
      %s20 = ssub.s32 %s14, 2
      %s21 = sadd.s32 %s14, 1
      %s22 = ssub.s32 %s14, %s21
      %p23 = scmp.eq.s32.totalorder %s22, 0
      %s25 = sadd.s32 %s24, 1
      %s26 = scalar_select %p23, %s24, %s25
      %p29 = pneg %p23
      %p30 = scmp.eq.s32.totalorder %s14, 2
      %p31 = por %p29, %p30
      %p32 = scmp.ne.s32.totalorder %s24, %s27
      %p33 = scmp.eq.s32.totalorder %s14, 0
      %p34 = por %p32, %p33
      %p35 = scmp.ne.s32.totalorder %s24, %s27
      %p36 = scmp.eq.s32.totalorder %s19, 2
      %p37 = por %p35, %p36
      %p38 = scmp.ne.s32.totalorder %s27, %s28
      %p39 = scmp.eq.s32.totalorder %s19, 0
      %p40 = por %p38, %p39
      %p41 = scmp.ne.s32.totalorder %s27, %s28
      %p42 = scmp.eq.s32.totalorder %s20, 2
      %p43 = por %p41, %p42
      %p45 = scmp.ne.s32.totalorder %s28, %s44
      %p46 = scmp.eq.s32.totalorder %s20, 0
      %p47 = por %p45, %p46
      %s49 = sadd.s32 %s48, 1
      %p52 = scmp.eq.s32.totalorder %s14, 2
      %p53 = scmp.ne.s32.totalorder %s48, %s50
      %p54 = scmp.eq.s32.totalorder %s14, 0
      %p55 = por %p53, %p54
      %p56 = scmp.ne.s32.totalorder %s48, %s50
      %p57 = scmp.eq.s32.totalorder %s19, 2
      %p58 = por %p56, %p57
      %p59 = scmp.ne.s32.totalorder %s50, %s51
      %p60 = scmp.eq.s32.totalorder %s19, 0
      %p61 = por %p59, %p60
      %p62 = scmp.ne.s32.totalorder %s50, %s51
      %p63 = scmp.eq.s32.totalorder %s20, 2
      %p64 = por %p62, %p63
      %p66 = scmp.ne.s32.totalorder %s51, %s65
      %p67 = scmp.eq.s32.totalorder %s20, 0
      %p68 = por %p66, %p67
      %s70 = sadd.s32 %s69, 1
      %p73 = scmp.eq.s32.totalorder %s14, 2
      %p74 = scmp.ne.s32.totalorder %s69, %s71
      %p75 = scmp.eq.s32.totalorder %s14, 0
      %p76 = por %p74, %p75
      %p77 = scmp.ne.s32.totalorder %s69, %s71
      %p78 = scmp.eq.s32.totalorder %s19, 2
      %p79 = por %p77, %p78
      %p80 = scmp.ne.s32.totalorder %s71, %s72
      %p81 = scmp.eq.s32.totalorder %s19, 0
      %p82 = por %p80, %p81
      %p83 = scmp.ne.s32.totalorder %s71, %s72
      %p84 = scmp.eq.s32.totalorder %s20, 2
      %p85 = por %p83, %p84
      %p87 = scmp.ne.s32.totalorder %s72, %s86
      %p88 = scmp.eq.s32.totalorder %s20, 0
      %p89 = por %p87, %p88
      %s91 = sadd.s32 %s90, 1
      %p94 = scmp.eq.s32.totalorder %s14, 2
      %p95 = scmp.ne.s32.totalorder %s90, %s92
      %p96 = scmp.eq.s32.totalorder %s14, 0
      %p97 = por %p95, %p96
      %p98 = scmp.ne.s32.totalorder %s90, %s92
      %p99 = scmp.eq.s32.totalorder %s19, 2
      %p100 = por %p98, %p99
      %p101 = scmp.ne.s32.totalorder %s92, %s93
      %p102 = scmp.eq.s32.totalorder %s19, 0
      %p103 = por %p101, %p102
      %p104 = scmp.ne.s32.totalorder %s92, %s93
      %p105 = scmp.eq.s32.totalorder %s20, 2
      %p106 = por %p104, %p105
      %p108 = scmp.ne.s32.totalorder %s93, %s107
      %p109 = scmp.eq.s32.totalorder %s20, 0
      %p110 = por %p108, %p109
      %s111 = ssub.s32 %s14, %s21
      %p112 = scmp.eq.s32.totalorder %s111, 0
      %s114 = sadd.s32 %s113, 1
      %s115 = scalar_select %p112, %s113, %s114
      %p118 = pneg %p112
      %p119 = scmp.eq.s32.totalorder %s14, 2
      %p120 = por %p118, %p119
      %p121 = scmp.ne.s32.totalorder %s113, %s116
      %p122 = scmp.eq.s32.totalorder %s14, 0
      %p123 = por %p121, %p122
      %p124 = scmp.ne.s32.totalorder %s113, %s116
      %p125 = scmp.eq.s32.totalorder %s19, 2
      %p126 = por %p124, %p125
      %p127 = scmp.ne.s32.totalorder %s116, %s117
      %p128 = scmp.eq.s32.totalorder %s19, 0
      %p129 = por %p127, %p128
      %p130 = scmp.ne.s32.totalorder %s116, %s117
      %p131 = scmp.eq.s32.totalorder %s20, 2
      %p132 = por %p130, %p131
      %p134 = scmp.ne.s32.totalorder %s117, %s133
      %p135 = scmp.eq.s32.totalorder %s20, 0
      %p136 = por %p134, %p135
      %p137 = scmp.le.s32.totalorder 1, %s14
      %p138 = scmp.lt.s32.totalorder %s14, 4
      %p139 = pnand %p137, %p138
      %p140 = pneg %p139
      // Predicated region
      $region9: #{tpu_custom_call.1} parent=5 // pred_check
        _
      $region10: #{tpu_custom_call.1} parent=5 // pred_check_branch
        %142 = sbr.rel (%p139) target = $region12
      $region11: #{tpu_custom_call.1} parent=5 // pred_region
        %s143 = ssub.s32 %s14, 1
        // Predicated region
        $region13: #{tpu_custom_call.1} parent=11 // pred_check
          %p144 = pneg %p61
        $region14: #{tpu_custom_call.1} parent=11 // pred_check_branch
          %146 = sbr.rel (%p144) target = $region16
        $region15: #{tpu_custom_call.1} parent=11 // pred_region
          _
        $region16: #{tpu_custom_call.1} parent=11 // pred_fallthru
          _
        // Predicated region
        $region17: #{tpu_custom_call.1} parent=11 // pred_check
          %p147 = pneg %p82
        $region18: #{tpu_custom_call.1} parent=11 // pred_check_branch
          %149 = sbr.rel (%p147) target = $region20
        $region19: #{tpu_custom_call.1} parent=11 // pred_region
          _
        $region20: #{tpu_custom_call.1} parent=11 // pred_fallthru
          _
        // Predicated region
        $region21: #{tpu_custom_call.1} parent=11 // pred_check
          %p150 = pneg %p103
        $region22: #{tpu_custom_call.1} parent=11 // pred_check_branch
          %152 = sbr.rel (%p150) target = $region24
        $region23: #{tpu_custom_call.1} parent=11 // pred_region
          _
        $region24: #{tpu_custom_call.1} parent=11 // pred_fallthru
          _
      $region12: #{tpu_custom_call.1} parent=5 // pred_fallthru
        _
      %p153 = scmp.lt.s32.totalorder %s14, 3
      // Predicated region
      $region25: #{tpu_custom_call.1} parent=5 // pred_check
        %p154 = pneg %p153
      $region26: #{tpu_custom_call.1} parent=5 // pred_check_branch
        %156 = sbr.rel (%p154) target = $region28
      $region27: #{tpu_custom_call.1} parent=5 // pred_region
        // Predicated region
        $region29: #{tpu_custom_call.1} parent=27 // pred_check
          %p157 = pneg %p34
        $region30: #{tpu_custom_call.1} parent=27 // pred_check_branch
          %159 = sbr.rel (%p157) target = $region32
        $region31: #{tpu_custom_call.1} parent=27 // pred_region
          %p160 = scmp.lt.s32.totalorder %s14, 2
          %s161 = scalar_select %p160, %s14, 2
          %s162 = smul.addr %s161, 8
          %s163 = scalar_lea.vmem %s0, %s162
        $region32: #{tpu_custom_call.1} parent=27 // pred_fallthru
          _
      $region28: #{tpu_custom_call.1} parent=5 // pred_fallthru
        _
      %p164 = scmp.le.s32.totalorder 1, %s14
      %p165 = scmp.lt.s32.totalorder %s14, 4
      %p166 = pnand %p164, %p165
      %p167 = pneg %p166
      // Predicated region
      $region33: #{tpu_custom_call.1} parent=5 // pred_check
        _
      $region34: #{tpu_custom_call.1} parent=5 // pred_check_branch
        %169 = sbr.rel (%p166) target = $region36
      $region35: #{tpu_custom_call.1} parent=5 // pred_region
        %s170 = ssub.s32 %s14, 1
        %p171 = scmp.lt.s32.totalorder %s19, 2
        %s172 = scalar_select %p171, %s19, 2
        %s173 = smul.addr %s172, 8
        %s174 = scalar_lea.vmem %s0, %s173
        %p175 = pneg %p40
        %p176 = pneg %p37
        %p177 = pneg %p61
        %p178 = pneg %p58
        %p179 = pneg %p82
        %p180 = pneg %p79
        %p181 = pneg %p103
        %p182 = pneg %p100
        %p183 = pneg %p129
        %p184 = pneg %p126
        %s185 = sand.u32 %s116, 1
        %s186 = scalar_lea.sflag [#allocation4], %s185
        %s187 = sand.u32 %s116, 1
        %s188 = smul.addr %s187, 8
        %s189 = scalar_lea.vmem [#allocation3], %s188
        %p190 = scmp.lt.s32.totalorder %s19, 2
        %s191 = scalar_select %p190, %s19, 2
        %s192 = smul.addr %s191, 8
        %s193 = scalar_lea.vmem %s0, %s192
        %v195 = vld [vmem:[%s193] sm:$0xff]
        %v196 = vpack.c.bf16 %v195, %v195
        %v197 = vld [vmem:[%s1] sm:$0x7]
        %v198 = vld [vmem:[%s2] sm:$0x1]
        %v200 = vlaneseq
        %v201 = vshrl.u32 %v200, 7
        %v202 = vsub.s32 0, %v201
        %v203 = vrot.slane %v198, %v202
        %vm205 = vcmask 39936
        %v207 = vsel %vm205, %v196, 0
        %vm209 = vcmask 1041408
        %vm210 = vcmask 1042432
        %v211 = vsel %vm209, 4294967295, 65535
        %v212 = vsel %vm210, %v211, 0
        %v214 = vand.u32 %v197, %v212
        %216 = vmatprep.subr.bf16.mxu0 0
        %217 = vmatpush1.bf16.msra.mxu0 0
        %218 = vmatprep.subr.bf16.mxu0 0
        %219 = vmatpush1.bf16.msra.mxu0 0
        %220 = vmatprep.subr.bf16.mxu0 0
        %221 = vmatpush1.bf16.msra.mxu0 0
        %222 = vmatprep.subr.bf16.mxu0 0
        %223 = vmatpush1.bf16.msra.mxu0 0
        %224 = vmatprep.subr.bf16.mxu0 0
        %225 = vmatpush1.bf16.msra.mxu0 0
        %226 = vmatprep.subr.bf16.mxu0 0
        %227 = vmatpush1.bf16.msra.mxu0 0
        %228 = vmatprep.subr.bf16.mxu0 0
        %229 = vmatpush1.bf16.msra.mxu0 0
        %230 = vmatprep.subr.bf16.mxu0 0
        %231 = vmatpush1.bf16.msra.mxu0 %v214
        %232 = vmatprep.subr.bf16.mxu0 0
        %233 = vmatpush2.bf16.msra.mxu0 0
        %234 = vmatprep.subr.bf16.mxu0 0
        %235 = vmatpush2.bf16.msra.mxu0 0
        %236 = vmatprep.subr.bf16.mxu0 0
        %237 = vmatpush2.bf16.msra.mxu0 0
        %238 = vmatprep.subr.bf16.mxu0 0
        %239 = vmatpush2.bf16.msra.mxu0 0
        %240 = vmatprep.subr.bf16.mxu0 0
        %241 = vmatpush2.bf16.msra.mxu0 0
        %242 = vmatprep.subr.bf16.mxu0 0
        %243 = vmatpush2.bf16.msra.mxu0 0
        %244 = vmatprep.subr.bf16.mxu0 0
        %245 = vmatpush2.bf16.msra.mxu0 0
        %246 = vmatprep.subr.bf16.mxu0 0
        %247 = vmatpush2.bf16.msra.mxu0 0
        %248 = vmatprep.mubr.bf16.mxu0 0
        %249 = vmatmul.mubr.bf16.gmra.mxu0 %v207
        %v250 = vpop.f32.mrf.mxu0
        %v251 = vadd.f32 %v203, %v250
        %v252 = vpop.f32.mrf.mxu0
        %v253 = vpop.f32.mrf.mxu0
        %v254 = vpop.f32.mrf.mxu0
        %255 = vdwg.mxu0
        %v256 = vmax.f32 %v251, 0.0
        %vm257 = vcmask 261120
        %258 = vst.msk [vmem:[%s189] sm:$0xff] %vm257, %v256
        %s259 = sand.u32 %s116, 1
        %s260 = scalar_lea.sflag [#allocation4], %s259
        %s261 = sand.u32 %s116, 1
        %s262 = smul.addr %s261, 8
        %s263 = scalar_lea.vmem [#allocation3], %s262
        // Predicated region
        $region37: #{tpu_custom_call.1} parent=35 // pred_check
          %p264 = pneg %p126
        $region38: #{tpu_custom_call.1} parent=35 // pred_check_branch
          %266 = sbr.rel (%p264) target = $region40
        $region39: #{tpu_custom_call.1} parent=35 // pred_region
          %s268 = ssub.s32 128, 128
          %269 = vsyncadd %s260, %s268
          %s270 = smul.addr %s19, 128
          %s271 = scalar_lea.hbm %s4, %s270
          %s273 = sshll.u32 %s263, 4
          %s274 = int_to_ptr.vmem [resolvable:$true] %s273
          %276 = dma.vmem_to_hbm [thread:$0]  %s274, 128, %s271, %s260
        $region40: #{tpu_custom_call.1} parent=35 // pred_fallthru
          _
      $region36: #{tpu_custom_call.1} parent=5 // pred_fallthru
        _
      %p277 = scmp.le.s32.totalorder 2, %s14
      // Predicated region
      $region41: #{tpu_custom_call.1} parent=5 // pred_check
        %p278 = pneg %p277
      $region42: #{tpu_custom_call.1} parent=5 // pred_check_branch
        %280 = sbr.rel (%p278) target = $region44
      $region43: #{tpu_custom_call.1} parent=5 // pred_region
        %s281 = ssub.s32 %s14, 2
        // Predicated region
        $region45: #{tpu_custom_call.1} parent=43 // pred_check
          %p282 = pneg %p132
        $region46: #{tpu_custom_call.1} parent=43 // pred_check_branch
          %284 = sbr.rel (%p282) target = $region48
        $region47: #{tpu_custom_call.1} parent=43 // pred_region
          %s285 = sand.u32 %s117, 1
          %s286 = scalar_lea.sflag [#allocation4], %s285
          %s287 = sand.u32 %s117, 1
          %s288 = smul.addr %s287, 8
          %s289 = scalar_lea.vmem [#allocation3], %s288
          %290 = dma.done %s286, 128
        $region48: #{tpu_custom_call.1} parent=43 // pred_fallthru
          _
      $region44: #{tpu_custom_call.1} parent=5 // pred_fallthru
        _
    $region6: #{tpu_custom_call.1} parent=1 // loop_footer
      %s18 = sadd.s32 1, %s14
    $region7: #{tpu_custom_call.1} parent=1 // loop_footer_branch
      %13 = sbr.rel target = $region3
    $region8: #{tpu_custom_call.1} parent=1 // loop_exit
      _
    %291 = vsyncpa [#allocation4], 1
    %s292 = scalar_lea.sflag [#allocation4], 1
    %293 = vsyncpa %s292, 1

</llo_original>
